<compile_context>
chip_gen: v7x
topology: tpu7x:2x2x1
jax: 0.10.0
libtpu: 0.0.40
codegen_flags: <defaults>
</compile_context>

<pallas_src>
import functools

import jax
import jax.numpy as jnp
from jax.experimental import pallas as pl
from jax.experimental.pallas import tpu as pltpu


def _round_up(x, m):
    return (x + m - 1) // m * m


# ----------------------------------------------------------------------------
# Kernels.  One (j, i, k) grid step:
#   x_ref:    (tm, tk)      activation slab
#   wt_ref:   (tk, tn)      pre-transposed base weight  W.T
#   xa_ref:   (tm, r_pad)   precomputed LoRA down-projection  x @ A.T
#   bt_ref:   (r_pad, tn)   pre-transposed lora_b * scaling
#   bias_ref: (1, tn)       f32 bias (bias variant only)
#   o_ref:    (tm, tn)
#   acc_ref:  (tm, tn)      f32 scratch -- base matmul accumulator over k
# ----------------------------------------------------------------------------
def _lora_kernel_bias(x_ref, wt_ref, xa_ref, bt_ref, bias_ref, o_ref, acc_ref):
    k = pl.program_id(2)

    @pl.when(k == 0)
    def _init():
        # Fold the bias into the accumulator init -- the write happens anyway,
        # so the epilogue loses one (tm, tn) VPU add.
        acc_ref[...] = jnp.broadcast_to(
            bias_ref[...].astype(jnp.float32), acc_ref.shape)

    acc_ref[...] += jnp.dot(x_ref[...], wt_ref[...],
                            preferred_element_type=jnp.float32)

    @pl.when(k == pl.num_programs(2) - 1)
    def _epilogue():
        # Rank-r up-projection (scaling already folded into bt), cast, store.
        lora = jnp.dot(xa_ref[...], bt_ref[...],
                       preferred_element_type=jnp.float32)
        o_ref[...] = (acc_ref[...] + lora).astype(o_ref.dtype)


def _lora_kernel_nobias(x_ref, wt_ref, xa_ref, bt_ref, o_ref, acc_ref):
    k = pl.program_id(2)

    @pl.when(k == 0)
    def _init():
        acc_ref[...] = jnp.zeros_like(acc_ref)

    acc_ref[...] += jnp.dot(x_ref[...], wt_ref[...],
                            preferred_element_type=jnp.float32)

    @pl.when(k == pl.num_programs(2) - 1)
    def _epilogue():
        lora = jnp.dot(xa_ref[...], bt_ref[...],
                       preferred_element_type=jnp.float32)
        o_ref[...] = (acc_ref[...] + lora).astype(o_ref.dtype)


# ----------------------------------------------------------------------------
# Factory: one-time parameter prep + an apply(x) closure that only does the
# per-call work (xa precompute, x padding, pallas_call).
# ----------------------------------------------------------------------------
def make_lora_linear(weight, lora_a, lora_b, bias, scaling, *,
                     tm=512, tn=512, tk=1024, compute_dtype=None):
    """Build a LoRA linear apply(x) for fixed parameters.

    weight: [out, in], lora_a: [r, in], lora_b: [out, r], bias: [out] or None.
    compute_dtype: dtype the matmuls run in (default: weight.dtype).  bf16
    halves HBM weight traffic; accumulation stays f32 either way.
    Per-generation tuning: on v6e with large M push tm toward 768-1024; on v7x
    (64 MiB VMEM/TC) keep tm around 384-512.
    """
    out_features, in_features = weight.shape
    r = lora_a.shape[0]
    cdt = jnp.dtype(compute_dtype) if compute_dtype is not None else jnp.dtype(weight.dtype)
    csz = cdt.itemsize

    # Keep (8, 128) alignment; clamp tiles to the (aligned) problem size so
    # small shapes don't over-allocate VMEM.
    tn = min(tn, _round_up(out_features, 128))
    tk = min(tk, _round_up(in_features, 128))
    N_pad = _round_up(out_features, tn)
    K_pad = _round_up(in_features, tk)
    r_pad = _round_up(r, 128)

    # ---- One-time parameter prep (hoisted out of the forward hot path) ------
    #  - pre-transpose so every contraction is a plain [.,K]x[K,.] MXU matmul
    #  - fold `scaling` into lora_b
    #  - zero-pad to tile multiples (exact no-op for the matmuls)
    #  - cast to the compute dtype once.
    w_t = jnp.pad(weight.astype(cdt).T,
                  ((0, K_pad - in_features), (0, N_pad - out_features)))
    a_t = jnp.pad(lora_a.astype(cdt).T, ((0, 0), (0, r_pad - r)))        # (in, r_pad)
    b_t = jnp.pad((lora_b.astype(jnp.float32) * scaling).astype(cdt).T,
                  ((0, r_pad - r), (0, N_pad - out_features)))           # (r_pad, N_pad)
    has_bias = bias is not None
    if has_bias:
        bias_p = jnp.pad(bias.astype(jnp.float32).reshape(1, out_features),
                         ((0, 0), (0, N_pad - out_features)))

    kernel = _lora_kernel_bias if has_bias else _lora_kernel_nobias

    # Sublane alignment for tm (bf16 packs (16,128) per vreg; int8/fp8 -> 32).
    m_align = max(8, 32 // csz)

    def apply(x):
        orig_shape = x.shape
        assert orig_shape[-1] == in_features
        x2d = x.reshape(-1, in_features)
        M = x2d.shape[0]
        out_dtype = x.dtype

        # Grow tm toward M so the weight is streamed from HBM exactly once
        # (grid_i == 1) in the common small-M LoRA regime.
        tm_eff = min(tm, _round_up(M, m_align))
        M_pad = _round_up(M, tm_eff)

        x_c = x2d.astype(cdt)
        # LoRA down-projection precomputed once per call (2*M*K*r flops, tiny).
        # This keeps the kernel from redoing it for every output-column tile
        # and lets j stay 'parallel' for v7x megacore sharding.
        xa = jnp.dot(x_c, a_t, preferred_element_type=jnp.float32).astype(cdt)

        x_p = jnp.pad(x_c, ((0, M_pad - M), (0, K_pad - in_features)))
        xa_p = jnp.pad(xa, ((0, M_pad - M), (0, 0)))

        grid_j = N_pad // tn
        grid_i = M_pad // tm_eff
        grid_k = K_pad // tk
        # j (output columns) leads so a megacore split gives each TC a disjoint
        # half of the weight stream; k (reduction) is last.
        grid = (grid_j, grid_i, grid_k)

        in_specs = [
            pl.BlockSpec((tm_eff, tk), lambda j, i, k: (i, k)),     # x
            pl.BlockSpec((tk, tn), lambda j, i, k: (k, j)),         # W.T
            pl.BlockSpec((tm_eff, r_pad), lambda j, i, k: (i, 0)),  # x @ A.T
            pl.BlockSpec((r_pad, tn), lambda j, i, k: (0, j)),      # scaled B.T
        ]
        args = [x_p, w_t, xa_p, b_t]
        if has_bias:
            in_specs.append(pl.BlockSpec((1, tn), lambda j, i, k: (0, j)))
            args.append(bias_p)

        osz = jnp.dtype(out_dtype).itemsize
        # Double-buffered input/output tiles + f32 accumulator scratch.
        vmem_needed = (2 * (tm_eff * tk * csz + tk * tn * csz
                            + tm_eff * r_pad * csz + r_pad * tn * csz
                            + tn * 4 + tm_eff * tn * osz)
                       + tm_eff * tn * 4)
        vmem_limit = min(max(vmem_needed + (8 << 20), 32 << 20), 56 << 20)

        cost = pl.CostEstimate(
            flops=2 * M_pad * K_pad * N_pad + 2 * M_pad * r_pad * N_pad,
            transcendentals=0,
            bytes_accessed=(x_p.size * csz * grid_j
                            + w_t.size * csz * grid_i
                            + xa_p.size * csz * grid_j
                            + b_t.size * csz
                            + (bias_p.size * 4 if has_bias else 0)
                            + M_pad * N_pad * osz),
        )

        out2d = pl.pallas_call(
            kernel,
            out_shape=jax.ShapeDtypeStruct((M_pad, N_pad), out_dtype),
            grid_spec=pltpu.PrefetchScalarGridSpec(
                num_scalar_prefetch=0,
                grid=grid,
                in_specs=in_specs,
                out_specs=pl.BlockSpec((tm_eff, tn), lambda j, i, k: (i, j)),
                scratch_shapes=[
                    pltpu.VMEM((tm_eff, tn), jnp.float32),   # base accumulator
                ],
            ),
            compiler_params=pltpu.CompilerParams(
                dimension_semantics=("parallel", "parallel", "arbitrary"),
                vmem_limit_bytes=vmem_limit),
            cost_estimate=cost,
        )(*args)

        out2d = out2d[:M, :out_features]
        return out2d.reshape(*orig_shape[:-1], out_features)

    return apply


def lora_linear(x, weight, lora_a, lora_b, bias, scaling, **kwargs):
    """One-shot convenience wrapper (prep is NOT cached across calls)."""
    return make_lora_linear(weight, lora_a, lora_b, bias, scaling, **kwargs)(x)


if __name__ == "__main__":
    key = jax.random.PRNGKey(0)

    # ---- Small problem (matches the module's intended usage) -----------------
    batch, seq = 2, 8
    in_features, out_features, r, alpha = 32, 32, 4, 8
    scaling = alpha / r

    kx, kw, kb, ka, kbb = jax.random.split(key, 5)
    x = jax.random.normal(kx, (batch, seq, in_features), dtype=jnp.float32)
    weight = jax.random.normal(kw, (out_features, in_features),
                               dtype=jnp.float32) * 0.1
    bias = jax.random.normal(kb, (out_features,), dtype=jnp.float32) * 0.1
    # __init__ zero-inits lora_b; use a nonzero lora_b so the LoRA path is live.
    lora_a = jax.random.uniform(ka, (r, in_features), dtype=jnp.float32,
                                minval=-0.5, maxval=0.5)
    lora_b = jax.random.normal(kbb, (out_features, r), dtype=jnp.float32) * 0.05

    # Parameter prep happens once here (hoisted out of the forward hot path);
    # the jitted apply only runs the per-call work.
    apply_small = jax.jit(make_lora_linear(weight, lora_a, lora_b, bias, scaling))
    out = jax.block_until_ready(apply_small(x))

    ref = x @ weight.T + bias + (x @ lora_a.T @ lora_b.T) * scaling
    assert out.shape == (batch, seq, out_features)
    assert jnp.allclose(out, ref, atol=1e-5, rtol=1e-5)

    # ---- No-bias variant (exercises the statically-built no-bias kernel) -----
    apply_nobias = jax.jit(make_lora_linear(weight, lora_a, lora_b, None, scaling))
    out_nb = jax.block_until_ready(apply_nobias(x))
    ref_nb = x @ weight.T + (x @ lora_a.T @ lora_b.T) * scaling
    assert jnp.allclose(out_nb, ref_nb, atol=1e-5, rtol=1e-5)

    # ---- Larger problem exercising padding / multi-tile paths ----------------
    b2, s2, in2, out2, r2 = 4, 72, 1024, 384, 8
    scaling2 = 16 / r2
    k1, k2, k3, k4, k5 = jax.random.split(jax.random.PRNGKey(1), 5)
    x2 = jax.random.normal(k1, (b2, s2, in2), dtype=jnp.float32)
    w2 = jax.random.normal(k2, (out2, in2), dtype=jnp.float32) * 0.05
    bias2 = jax.random.normal(k3, (out2,), dtype=jnp.float32) * 0.1
    a2 = jax.random.uniform(k4, (r2, in2), dtype=jnp.float32,
                            minval=-0.1, maxval=0.1)
    bb2 = jax.random.normal(k5, (out2, r2), dtype=jnp.float32) * 0.05

    apply_big = jax.jit(make_lora_linear(w2, a2, bb2, bias2, scaling2))
    out_big = jax.block_until_ready(apply_big(x2))

    hp = jax.lax.Precision.HIGHEST
    base_ref = jnp.einsum("bsi,oi->bso", x2, w2, precision=hp) + bias2
    lora_ref = jnp.einsum("bsr,or->bso",
                          jnp.einsum("bsi,ri->bsr", x2, a2, precision=hp),
                          bb2, precision=hp) * scaling2
    ref_big = base_ref + lora_ref
    assert out_big.shape == (b2, s2, out2)
    assert jnp.allclose(out_big, ref_big, atol=1e-3, rtol=1e-3)

    # ---- bf16 compute path (halves HBM weight traffic; loose tolerance) ------
    apply_bf16 = jax.jit(make_lora_linear(w2, a2, bb2, bias2, scaling2,
                                          compute_dtype=jnp.bfloat16))
    out_bf16 = jax.block_until_ready(apply_bf16(x2))
    rel_err = float(jnp.max(jnp.abs(out_bf16 - ref_big))) / float(
        jnp.max(jnp.abs(ref_big)))
    assert rel_err < 8e-2, rel_err

    print("KERNEL_OK")
</pallas_src>

<mosaic_0001>
module attributes {stable_mosaic.version = 11 : i64} {
  func.func @_lora_kernel_bias(%arg0: i32, %arg1: i32, %arg2: i32, %arg3: memref<16x128xf32, #tpu.memory_space<vmem>>, %arg4: memref<128x128xf32, #tpu.memory_space<vmem>>, %arg5: memref<16x128xf32, #tpu.memory_space<vmem>>, %arg6: memref<128x128xf32, #tpu.memory_space<vmem>>, %arg7: memref<1x128xf32, #tpu.memory_space<vmem>>, %arg8: memref<16x128xf32, #tpu.memory_space<vmem>>, %arg9: memref<16x128xf32, #tpu.memory_space<vmem>>) attributes {dimension_semantics = [#tpu.dimension_semantics<parallel>, #tpu.dimension_semantics<parallel>, #tpu.dimension_semantics<arbitrary>], iteration_bounds = array<i64: 1, 1, 1>, scalar_prefetch = 0 : i64, scratch_operands = 1 : i64, tpu.core_type = #tpu.core_type<tc>, window_params = [{transform_indices = @transform_0, window_bounds = array<i64: 16, 128>}, {transform_indices = @transform_1, window_bounds = array<i64: 128, 128>}, {transform_indices = @transform_2, window_bounds = array<i64: 16, 128>}, {transform_indices = @transform_3, window_bounds = array<i64: 128, 128>}, {transform_indices = @transform_4, window_bounds = array<i64: 1, 128>}, {transform_indices = @transform_5, window_bounds = array<i64: 16, 128>}]} {
    %c0_i32 = arith.constant 0 : i32
    %0 = arith.cmpi eq, %arg2, %c0_i32 : i32
    %1 = arith.extui %0 : i1 to i32
    %c0_i32_0 = arith.constant 0 : i32
    %2 = arith.cmpi ne, %1, %c0_i32_0 : i32
    scf.if %2 {
      %c0_10 = arith.constant 0 : index
      %c0_11 = arith.constant 0 : index
      %12 = vector.load %arg7[%c0_10, %c0_11] : memref<1x128xf32, #tpu.memory_space<vmem>>, vector<1x128xf32>
      %13 = vector.shape_cast %12 : vector<1x128xf32> to vector<1x128xf32>
      %14 = vector.broadcast %13 : vector<1x128xf32> to vector<16x128xf32>
      %c0_12 = arith.constant 0 : index
      %c0_13 = arith.constant 0 : index
      %15 = vector.load %arg9[%c0_12, %c0_13] : memref<16x128xf32, #tpu.memory_space<vmem>>, vector<16x128xf32>
      tpu.vector_store %arg9[%c0_12, %c0_13], %14 {strides = array<i32>} : memref<16x128xf32, #tpu.memory_space<vmem>>, vector<16x128xf32>,
    } else {
    }
    %c0 = arith.constant 0 : index
    %c0_1 = arith.constant 0 : index
    %3 = vector.load %arg9[%c0, %c0_1] : memref<16x128xf32, #tpu.memory_space<vmem>>, vector<16x128xf32>
    %c0_2 = arith.constant 0 : index
    %c0_3 = arith.constant 0 : index
    %4 = vector.load %arg3[%c0_2, %c0_3] : memref<16x128xf32, #tpu.memory_space<vmem>>, vector<16x128xf32>
    %c0_4 = arith.constant 0 : index
    %c0_5 = arith.constant 0 : index
    %5 = vector.load %arg4[%c0_4, %c0_5] : memref<128x128xf32, #tpu.memory_space<vmem>>, vector<128x128xf32>
    %cst = arith.constant dense<0.000000e+00> : vector<16x128xf32>
    %6 = tpu.matmul %4, %5, %cst {dimension_numbers = #tpu.dot_dimension_numbers<[1], [0], [0], [1], [0, 0, 1, 1], [], []>} : vector<16x128xf32>, vector<128x128xf32>, vector<16x128xf32> -> vector<16x128xf32>
    %7 = arith.addf %3, %6 : vector<16x128xf32>
    %c0_6 = arith.constant 0 : index
    %c0_7 = arith.constant 0 : index
    %8 = vector.load %arg9[%c0_6, %c0_7] : memref<16x128xf32, #tpu.memory_space<vmem>>, vector<16x128xf32>
    tpu.vector_store %arg9[%c0_6, %c0_7], %7 {strides = array<i32>} : memref<16x128xf32, #tpu.memory_space<vmem>>, vector<16x128xf32>,
    %c0_i32_8 = arith.constant 0 : i32
    %9 = arith.cmpi eq, %arg2, %c0_i32_8 : i32
    %10 = arith.extui %9 : i1 to i32
    %c0_i32_9 = arith.constant 0 : i32
    %11 = arith.cmpi ne, %10, %c0_i32_9 : i32
    scf.if %11 {
      %c0_10 = arith.constant 0 : index
      %c0_11 = arith.constant 0 : index
      %12 = vector.load %arg5[%c0_10, %c0_11] : memref<16x128xf32, #tpu.memory_space<vmem>>, vector<16x128xf32>
      %c0_12 = arith.constant 0 : index
      %c0_13 = arith.constant 0 : index
      %13 = vector.load %arg6[%c0_12, %c0_13] : memref<128x128xf32, #tpu.memory_space<vmem>>, vector<128x128xf32>
      %cst_14 = arith.constant dense<0.000000e+00> : vector<16x128xf32>
      %14 = tpu.matmul %12, %13, %cst_14 {dimension_numbers = #tpu.dot_dimension_numbers<[1], [0], [0], [1], [0, 0, 1, 1], [], []>} : vector<16x128xf32>, vector<128x128xf32>, vector<16x128xf32> -> vector<16x128xf32>
      %c0_15 = arith.constant 0 : index
      %c0_16 = arith.constant 0 : index
      %15 = vector.load %arg9[%c0_15, %c0_16] : memref<16x128xf32, #tpu.memory_space<vmem>>, vector<16x128xf32>
      %16 = arith.addf %15, %14 : vector<16x128xf32>
      %c0_17 = arith.constant 0 : index
      %c0_18 = arith.constant 0 : index
      %17 = vector.load %arg8[%c0_17, %c0_18] : memref<16x128xf32, #tpu.memory_space<vmem>>, vector<16x128xf32>
      tpu.vector_store %arg8[%c0_17, %c0_18], %16 {strides = array<i32>} : memref<16x128xf32, #tpu.memory_space<vmem>>, vector<16x128xf32>,
    } else {
    }
    return
  }
  func.func @transform_0(%arg0: i32, %arg1: i32, %arg2: i32) -> (i32, i32) {
    %c0_i32 = arith.constant 0 : i32
    return %arg1, %arg2 : i32, i32
  }
  func.func @transform_1(%arg0: i32, %arg1: i32, %arg2: i32) -> (i32, i32) {
    %c0_i32 = arith.constant 0 : i32
    return %arg2, %arg0 : i32, i32
  }
  func.func @transform_2(%arg0: i32, %arg1: i32, %arg2: i32) -> (i32, i32) {
    %c0_i32 = arith.constant 0 : i32
    %c0_i32_0 = arith.constant 0 : i32
    return %arg1, %c0_i32 : i32, i32
  }
  func.func @transform_3(%arg0: i32, %arg1: i32, %arg2: i32) -> (i32, i32) {
    %c0_i32 = arith.constant 0 : i32
    %c0_i32_0 = arith.constant 0 : i32
    return %c0_i32, %arg0 : i32, i32
  }
  func.func @transform_4(%arg0: i32, %arg1: i32, %arg2: i32) -> (i32, i32) {
    %c0_i32 = arith.constant 0 : i32
    %c0_i32_0 = arith.constant 0 : i32
    return %c0_i32, %arg0 : i32, i32
  }
  func.func @transform_5(%arg0: i32, %arg1: i32, %arg2: i32) -> (i32, i32) {
    %c0_i32 = arith.constant 0 : i32
    return %arg1, %arg0 : i32, i32
  }
}

</mosaic_0001>

<llo_original>
// kernel: apply.1
$region0: #{apply.1}
  #allocation0 [shape = 'u32[]', space=smem, size = 0x4, offset = 0x4, fixed_abs, tag = 'smem constant byte address 0x4 - core index']
  #allocation1 [shape = 'u32[144,128]{1,0:T(1,128)}', space=vmem, size = 0x12000, scoped, tag = 'internal scratch']
  #allocation2 [shape = 'f32[16,128]{1,0:T(8,128)}', space=vmem, size = 0x2000, scoped, tag = 'scratch operand']
  %s0 = inlined_call_operand.vmem [shape: f32[16,128], index: 0, kind: input, shape index: {}]
  %s1 = inlined_call_operand.hbm [shape: f32[128,128], index: 1, kind: input, shape index: {}]
  %s2 = inlined_call_operand.vmem [shape: f32[16,128], index: 2, kind: input, shape index: {}]
  %s3 = inlined_call_operand.hbm [shape: f32[128,128], index: 3, kind: input, shape index: {}]
  %s4 = inlined_call_operand.vmem [shape: f32[1,128], index: 4, kind: input, shape index: {}]
  %s5 = inlined_call_operand.vmem [shape: f32[16,128], index: 5, kind: output, shape index: {}]
  %s6 = sld [smem:[#allocation0]]
  $region46: #{apply.1} parent=0
    _
  %s8 = ssub.s32 1, %s6
  %s9 = scalar_select 0, %s8, %s6
  $region1: #{apply.1} parent=0
    #allocation3 [shape = 'u8[65536]{0}', space=vmem, size = 0x10000, scoped, tag = 'input window, operand 1, single buffered']
    #allocation4 [shape = 's32[1]{0}', space=sflag, size = 0x4, scoped, tag = 'scoped memory for apply.1']
    #allocation5 [shape = 'u8[65536]{0}', space=vmem, size = 0x10000, scoped, tag = 'input window, operand 3, single buffered']
    #allocation6 [shape = 's32[1]{0}', space=sflag, size = 0x4, scoped, tag = 'scoped memory for apply.1']
    %10 = vsyncpa [#allocation4], 0
    %11 = vsyncpa [#allocation6], 0
    // Predicated region
    $region2: #{apply.1} parent=1 // pred_check
      _
    $region3: #{apply.1} parent=1 // pred_check_branch
      %13 = sbr.rel (0) target = $region5
    $region4: #{apply.1} parent=1 // pred_region
      _
    $region5: #{apply.1} parent=1 // pred_fallthru
      _
    // Predicated region
    $region6: #{apply.1} parent=1 // pred_check
      _
    $region7: #{apply.1} parent=1 // pred_check_branch
      %15 = sbr.rel (0) target = $region9
    $region8: #{apply.1} parent=1 // pred_region
      %s17 = ssub.s32 2048, 2048
      %18 = vsyncadd [#allocation4], %s17
      %s19 = sshll.u32 [#allocation3], 4
      %s20 = int_to_ptr.vmem [resolvable:$true] %s19
      %25 = dma.hbm_to_vmem [thread:$0]  %s1, 2048, %s20, [#allocation4], 128, 128, 8
    $region9: #{apply.1} parent=1 // pred_fallthru
      _
    // Predicated region
    $region10: #{apply.1} parent=1 // pred_check
      _
    $region11: #{apply.1} parent=1 // pred_check_branch
      %27 = sbr.rel (0) target = $region13
    $region12: #{apply.1} parent=1 // pred_region
      _
    $region13: #{apply.1} parent=1 // pred_fallthru
      _
    // Predicated region
    $region14: #{apply.1} parent=1 // pred_check
      _
    $region15: #{apply.1} parent=1 // pred_check_branch
      %29 = sbr.rel (0) target = $region17
    $region16: #{apply.1} parent=1 // pred_region
      %s31 = ssub.s32 2048, 2048
      %32 = vsyncadd [#allocation6], %s31
      %s33 = sshll.u32 [#allocation5], 4
      %s34 = int_to_ptr.vmem [resolvable:$true] %s33
      %39 = dma.hbm_to_vmem [thread:$0]  %s3, 2048, %s34, [#allocation6], 128, 128, 8
    $region17: #{apply.1} parent=1 // pred_fallthru
      _
    // Predicated region
    $region18: #{apply.1} parent=1 // pred_check
      _
    $region19: #{apply.1} parent=1 // pred_check_branch
      %41 = sbr.rel (0) target = $region21
    $region20: #{apply.1} parent=1 // pred_region
      _
    $region21: #{apply.1} parent=1 // pred_fallthru
      _
    // Predicated region
    $region22: #{apply.1} parent=1 // pred_check
      _
    $region23: #{apply.1} parent=1 // pred_check_branch
      %43 = sbr.rel (0) target = $region25
    $region24: #{apply.1} parent=1 // pred_region
      %44 = dma.done [#allocation4], 2048
    $region25: #{apply.1} parent=1 // pred_fallthru
      _
    // Predicated region
    $region26: #{apply.1} parent=1 // pred_check
      _
    $region27: #{apply.1} parent=1 // pred_check_branch
      %46 = sbr.rel (0) target = $region29
    $region28: #{apply.1} parent=1 // pred_region
      %47 = dma.done [#allocation6], 2048
    $region29: #{apply.1} parent=1 // pred_fallthru
      _
    %p48 = scmp.eq.s32.totalorder 0, 0
    // Predicated region
    $region30: #{apply.1} parent=1 // pred_check
      %p49 = pneg %p48
    $region31: #{apply.1} parent=1 // pred_check_branch
      %51 = sbr.rel (%p49) target = $region33
    $region32: #{apply.1} parent=1 // pred_region
      %v52 = vld [vmem:[%s4] sm:$0x1]
      %v54 = vlaneseq
      %v55 = vshrl.u32 %v54, 7
      %v56 = vsub.s32 0, %v55
      %v57 = vrot.slane %v52, %v56
      %59 = vst [vmem:[#allocation2] sm:$0xff] %v57
      %60 = vst [vmem:[#allocation2 + $0x8] sm:$0xff] %v57
    $region33: #{apply.1} parent=1 // pred_fallthru
      _
    %v61 = vld [vmem:[#allocation2] sm:$0xff]
    %v62 = vld [vmem:[#allocation2 + $0x8] sm:$0xff]
    %v63 = vld [vmem:[%s0] sm:$0xff]
    %v64 = vld [vmem:[%s0 + $0x8] sm:$0xff]
    %v65 = vld [vmem:[#allocation3] sm:$0xff]
    %v66 = vld [vmem:[#allocation3 + $0x8] sm:$0xff]
    %v67 = vld [vmem:[#allocation3 + $0x10] sm:$0xff]
    %v68 = vld [vmem:[#allocation3 + $0x18] sm:$0xff]
    %v69 = vld [vmem:[#allocation3 + $0x20] sm:$0xff]
    %v70 = vld [vmem:[#allocation3 + $0x28] sm:$0xff]
    %v71 = vld [vmem:[#allocation3 + $0x30] sm:$0xff]
    %v72 = vld [vmem:[#allocation3 + $0x38] sm:$0xff]
    %v73 = vld [vmem:[#allocation3 + $0x40] sm:$0xff]
    %v74 = vld [vmem:[#allocation3 + $0x48] sm:$0xff]
    %v75 = vld [vmem:[#allocation3 + $0x50] sm:$0xff]
    %v76 = vld [vmem:[#allocation3 + $0x58] sm:$0xff]
    %v77 = vld [vmem:[#allocation3 + $0x60] sm:$0xff]
    %v78 = vld [vmem:[#allocation3 + $0x68] sm:$0xff]
    %v79 = vld [vmem:[#allocation3 + $0x70] sm:$0xff]
    %v80 = vld [vmem:[#allocation3 + $0x78] sm:$0xff]
    %81 = vmatprep.subr.mxu0 0.0
    %82 = vmatpush1.msra.mxu0 %v65
    %83 = vmatprep.subr.mxu0 0.0
    %84 = vmatpush1.msra.mxu0 %v66
    %85 = vmatprep.subr.mxu0 0.0
    %86 = vmatpush1.msra.mxu0 %v67
    %87 = vmatprep.subr.mxu0 0.0
    %88 = vmatpush1.msra.mxu0 %v68
    %89 = vmatprep.subr.mxu0 0.0
    %90 = vmatpush1.msra.mxu0 %v69
    %91 = vmatprep.subr.mxu0 0.0
    %92 = vmatpush1.msra.mxu0 %v70
    %93 = vmatprep.subr.mxu0 0.0
    %94 = vmatpush1.msra.mxu0 %v71
    %95 = vmatprep.subr.mxu0 0.0
    %96 = vmatpush1.msra.mxu0 %v72
    %97 = vmatprep.subr.mxu0 0.0
    %98 = vmatpush1.msra.mxu0 %v73
    %99 = vmatprep.subr.mxu0 0.0
    %100 = vmatpush1.msra.mxu0 %v74
    %101 = vmatprep.subr.mxu0 0.0
    %102 = vmatpush1.msra.mxu0 %v75
    %103 = vmatprep.subr.mxu0 0.0
    %104 = vmatpush1.msra.mxu0 %v76
    %105 = vmatprep.subr.mxu0 0.0
    %106 = vmatpush1.msra.mxu0 %v77
    %107 = vmatprep.subr.mxu0 0.0
    %108 = vmatpush1.msra.mxu0 %v78
    %109 = vmatprep.subr.mxu0 0.0
    %110 = vmatpush1.msra.mxu0 %v79
    %111 = vmatprep.subr.mxu0 0.0
    %112 = vmatpush1.msra.mxu0 %v80
    %113 = vmatprep.subr.mxu0 0.0
    %114 = vmatpush1.msra.mxu0 0.0
    %115 = vmatprep.subr.mxu0 0.0
    %116 = vmatpush1.msra.mxu0 0.0
    %117 = vmatprep.subr.mxu0 0.0
    %118 = vmatpush1.msra.mxu0 0.0
    %119 = vmatprep.subr.mxu0 0.0
    %120 = vmatpush1.msra.mxu0 0.0
    %121 = vmatprep.subr.mxu0 0.0
    %122 = vmatpush1.msra.mxu0 0.0
    %123 = vmatprep.subr.mxu0 0.0
    %124 = vmatpush1.msra.mxu0 0.0
    %125 = vmatprep.subr.mxu0 0.0
    %126 = vmatpush1.msra.mxu0 0.0
    %127 = vmatprep.subr.mxu0 0.0
    %128 = vmatpush1.msra.mxu0 0.0
    %129 = vmatprep.subr.mxu0 0.0
    %130 = vmatpush1.msra.mxu0 0.0
    %131 = vmatprep.subr.mxu0 0.0
    %132 = vmatpush1.msra.mxu0 0.0
    %133 = vmatprep.subr.mxu0 0.0
    %134 = vmatpush1.msra.mxu0 0.0
    %135 = vmatprep.subr.mxu0 0.0
    %136 = vmatpush1.msra.mxu0 0.0
    %137 = vmatprep.subr.mxu0 0.0
    %138 = vmatpush1.msra.mxu0 0.0
    %139 = vmatprep.subr.mxu0 0.0
    %140 = vmatpush1.msra.mxu0 0.0
    %141 = vmatprep.subr.mxu0 0.0
    %142 = vmatpush1.msra.mxu0 0.0
    %143 = vmatprep.subr.mxu0 0.0
    %144 = vmatpush1.msra.mxu0 0.0
    %145 = vmatprep.mubr.f32.mxu0 0.0
    %146 = vmatmul.mubr.f32.gmra.mrb[0].mxu0 %v63
    %v147 = vpop.f32.mrb[0].mxu0
    %v148 = vadd.f32 0.0, %v147
    %v149 = vpop.f32.mrb[0].mxu0
    %150 = vmatprep.mubr.f32.mxu0 0.0
    %151 = vmatmul.mubr.f32.gmra.mrb[0].mxu0 %v64
    %v152 = vpop.f32.mrb[0].mxu0
    %v153 = vadd.f32 0.0, %v152
    %v154 = vpop.f32.mrb[0].mxu0
    %155 = vdwg.mxu0
    %v156 = vadd.f32 %v61, %v148
    %v157 = vadd.f32 %v62, %v153
    %158 = vst [vmem:[#allocation2] sm:$0xff] %v156
    %159 = vst [vmem:[#allocation2 + $0x8] sm:$0xff] %v157
    // Predicated region
    $region34: #{apply.1} parent=1 // pred_check
      %p160 = pneg %p48
    $region35: #{apply.1} parent=1 // pred_check_branch
      %162 = sbr.rel (%p160) target = $region37
    $region36: #{apply.1} parent=1 // pred_region
      %v163 = vld [vmem:[%s2] sm:$0xff]
      %v164 = vld [vmem:[%s2 + $0x8] sm:$0xff]
      %v165 = vld [vmem:[#allocation5] sm:$0xff]
      %v166 = vld [vmem:[#allocation5 + $0x8] sm:$0xff]
      %v167 = vld [vmem:[#allocation5 + $0x10] sm:$0xff]
      %v168 = vld [vmem:[#allocation5 + $0x18] sm:$0xff]
      %v169 = vld [vmem:[#allocation5 + $0x20] sm:$0xff]
      %v170 = vld [vmem:[#allocation5 + $0x28] sm:$0xff]
      %v171 = vld [vmem:[#allocation5 + $0x30] sm:$0xff]
      %v172 = vld [vmem:[#allocation5 + $0x38] sm:$0xff]
      %v173 = vld [vmem:[#allocation5 + $0x40] sm:$0xff]
      %v174 = vld [vmem:[#allocation5 + $0x48] sm:$0xff]
      %v175 = vld [vmem:[#allocation5 + $0x50] sm:$0xff]
      %v176 = vld [vmem:[#allocation5 + $0x58] sm:$0xff]
      %v177 = vld [vmem:[#allocation5 + $0x60] sm:$0xff]
      %v178 = vld [vmem:[#allocation5 + $0x68] sm:$0xff]
      %v179 = vld [vmem:[#allocation5 + $0x70] sm:$0xff]
      %v180 = vld [vmem:[#allocation5 + $0x78] sm:$0xff]
      %181 = vmatprep.subr.mxu0 0.0
      %182 = vmatpush1.msra.mxu0 %v165
      %183 = vmatprep.subr.mxu0 0.0
      %184 = vmatpush1.msra.mxu0 %v166
      %185 = vmatprep.subr.mxu0 0.0
      %186 = vmatpush1.msra.mxu0 %v167
      %187 = vmatprep.subr.mxu0 0.0
      %188 = vmatpush1.msra.mxu0 %v168
      %189 = vmatprep.subr.mxu0 0.0
      %190 = vmatpush1.msra.mxu0 %v169
      %191 = vmatprep.subr.mxu0 0.0
      %192 = vmatpush1.msra.mxu0 %v170
      %193 = vmatprep.subr.mxu0 0.0
      %194 = vmatpush1.msra.mxu0 %v171
      %195 = vmatprep.subr.mxu0 0.0
      %196 = vmatpush1.msra.mxu0 %v172
      %197 = vmatprep.subr.mxu0 0.0
      %198 = vmatpush1.msra.mxu0 %v173
      %199 = vmatprep.subr.mxu0 0.0
      %200 = vmatpush1.msra.mxu0 %v174
      %201 = vmatprep.subr.mxu0 0.0
      %202 = vmatpush1.msra.mxu0 %v175
      %203 = vmatprep.subr.mxu0 0.0
      %204 = vmatpush1.msra.mxu0 %v176
      %205 = vmatprep.subr.mxu0 0.0
      %206 = vmatpush1.msra.mxu0 %v177
      %207 = vmatprep.subr.mxu0 0.0
      %208 = vmatpush1.msra.mxu0 %v178
      %209 = vmatprep.subr.mxu0 0.0
      %210 = vmatpush1.msra.mxu0 %v179
      %211 = vmatprep.subr.mxu0 0.0
      %212 = vmatpush1.msra.mxu0 %v180
      %213 = vmatprep.subr.mxu0 0.0
      %214 = vmatpush1.msra.mxu0 0.0
      %215 = vmatprep.subr.mxu0 0.0
      %216 = vmatpush1.msra.mxu0 0.0
      %217 = vmatprep.subr.mxu0 0.0
      %218 = vmatpush1.msra.mxu0 0.0
      %219 = vmatprep.subr.mxu0 0.0
      %220 = vmatpush1.msra.mxu0 0.0
      %221 = vmatprep.subr.mxu0 0.0
      %222 = vmatpush1.msra.mxu0 0.0
      %223 = vmatprep.subr.mxu0 0.0
      %224 = vmatpush1.msra.mxu0 0.0
      %225 = vmatprep.subr.mxu0 0.0
      %226 = vmatpush1.msra.mxu0 0.0
      %227 = vmatprep.subr.mxu0 0.0
      %228 = vmatpush1.msra.mxu0 0.0
      %229 = vmatprep.subr.mxu0 0.0
      %230 = vmatpush1.msra.mxu0 0.0
      %231 = vmatprep.subr.mxu0 0.0
      %232 = vmatpush1.msra.mxu0 0.0
      %233 = vmatprep.subr.mxu0 0.0
      %234 = vmatpush1.msra.mxu0 0.0
      %235 = vmatprep.subr.mxu0 0.0
      %236 = vmatpush1.msra.mxu0 0.0
      %237 = vmatprep.subr.mxu0 0.0
      %238 = vmatpush1.msra.mxu0 0.0
      %239 = vmatprep.subr.mxu0 0.0
      %240 = vmatpush1.msra.mxu0 0.0
      %241 = vmatprep.subr.mxu0 0.0
      %242 = vmatpush1.msra.mxu0 0.0
      %243 = vmatprep.subr.mxu0 0.0
      %244 = vmatpush1.msra.mxu0 0.0
      %245 = vmatprep.mubr.f32.mxu0 0.0
      %246 = vmatmul.mubr.f32.gmra.mrb[0].mxu0 %v163
      %v247 = vpop.f32.mrb[0].mxu0
      %v248 = vadd.f32 0.0, %v247
      %v249 = vpop.f32.mrb[0].mxu0
      %250 = vmatprep.mubr.f32.mxu0 0.0
      %251 = vmatmul.mubr.f32.gmra.mrb[0].mxu0 %v164
      %v252 = vpop.f32.mrb[0].mxu0
      %v253 = vadd.f32 0.0, %v252
      %v254 = vpop.f32.mrb[0].mxu0
      %255 = vdwg.mxu0
      %v256 = vld [vmem:[#allocation2] sm:$0xff]
      %v257 = vld [vmem:[#allocation2 + $0x8] sm:$0xff]
      %v258 = vadd.f32 %v256, %v248
      %v259 = vadd.f32 %v257, %v253
      %260 = vst [vmem:[%s5] sm:$0xff] %v258
      %261 = vst [vmem:[%s5 + $0x8] sm:$0xff] %v259
    $region37: #{apply.1} parent=1 // pred_fallthru
      _
    // Predicated region
    $region38: #{apply.1} parent=1 // pred_check
      _
    $region39: #{apply.1} parent=1 // pred_check_branch
      %263 = sbr.rel (0) target = $region41
    $region40: #{apply.1} parent=1 // pred_region
      _
    $region41: #{apply.1} parent=1 // pred_fallthru
      _
    // Predicated region
    $region42: #{apply.1} parent=1 // pred_check
      _
    $region43: #{apply.1} parent=1 // pred_check_branch
      %265 = sbr.rel (0) target = $region45
    $region44: #{apply.1} parent=1 // pred_region
      _
    $region45: #{apply.1} parent=1 // pred_fallthru
      _
    %266 = vsyncpa [#allocation4], 1
    %267 = vsyncpa [#allocation6], 1

</llo_original>
